<compile_context>
chip_gen: v6e
topology: v6e:2x2x1
jax: 0.10.0
libtpu: 0.0.40
codegen_flags: <defaults>
</compile_context>

<pallas_src>
import functools
import math

import jax
import jax.numpy as jnp
from jax.experimental import pallas as pl
from jax.experimental.pallas import tpu as pltpu

# ------------------------- model hyper-parameters --------------------------
VOCAB = 256          # vocabulary size
D_MODEL = 128        # embedding dim (lane-dense: multiple of 128)
B, S = 2, 8          # batch, sequence length


# --------------------------------- kernel ----------------------------------
def _make_kernel(token_tile, scale):
    """Builds the gather kernel for a fixed token tile size."""

    def kernel(ids_smem, lut_hbm, out_ref, rows_vmem, sems):
        # ids_smem : (T_pad,) int32 in SMEM (scalar prefetch)
        # lut_hbm  : (VOCAB, D) f32 ref left in HBM (memory_space=pl.ANY)
        # out_ref  : (token_tile, D) f32 VMEM output block (lane-dense)
        # rows_vmem: (token_tile, D) f32 VMEM scratch for the gathered rows
        # sems     : (token_tile,) DMA semaphores (one per in-flight row)
        base = pl.program_id(0) * token_tile

        # Issue all row DMAs first so they overlap each other.
        copies = []
        for t in range(token_tile):                 # static unroll
            row = ids_smem[base + t]
            cp = pltpu.make_async_copy(
                lut_hbm.at[pl.ds(row, 1), :],       # (1, D) row in HBM
                rows_vmem.at[pl.ds(t, 1), :],       # (1, D) slot in VMEM
                sems.at[t],
            )
            cp.start()
            copies.append(cp)
        for cp in copies:
            cp.wait()

        # sqrt(d_model) scale fused into the single copy-out pass.
        out_ref[...] = rows_vmem[...] * scale

    return kernel


# ------------------------------ host wrapper --------------------------------
def _round_up(x, m):
    return (x + m - 1) // m * m


@functools.partial(jax.jit, static_argnames=("token_tile",))
def embeddings_forward(ids, lut, *, token_tile=128):
    """ids: (B, S) int token indices, lut: (VOCAB, D) f32.
    Returns (B, S, D) f32 = lut[ids] * sqrt(D)."""
    b, s = ids.shape
    v, d = lut.shape
    t = b * s

    # Token tile: large (128) to amortize per-step overhead, but never more
    # than the (sublane-aligned) token count for tiny batches.
    tile = min(token_tile, _round_up(t, 8))
    t_pad = _round_up(t, tile)

    # NOTE: nn.Embedding raises on out-of-range ids; we clamp instead so an
    # invalid id can never drive an out-of-bounds HBM DMA (review concern).
    ids_flat = jnp.clip(ids.reshape(-1).astype(jnp.int32), 0, v - 1)
    ids_flat = jnp.pad(ids_flat, (0, t_pad - t))    # padded rows are discarded

    scale = float(math.sqrt(d))                      # static Python constant
    kernel = _make_kernel(tile, scale)

    grid_spec = pltpu.PrefetchScalarGridSpec(
        num_scalar_prefetch=1,                       # ids -> SMEM
        grid=(t_pad // tile,),                       # token-tile axis
        in_specs=[pl.BlockSpec(memory_space=pl.ANY)],  # lut stays in HBM
        out_specs=pl.BlockSpec((tile, d), lambda i, ids_ref: (i, 0)),
        scratch_shapes=[
            pltpu.VMEM((tile, d), jnp.float32),      # gathered rows
            pltpu.SemaphoreType.DMA((tile,)),        # one sem per row DMA
        ],
    )

    out_flat = pl.pallas_call(
        kernel,
        grid_spec=grid_spec,
        out_shape=jax.ShapeDtypeStruct((t_pad, d), jnp.float32),
        compiler_params=pltpu.CompilerParams(
            # Each token tile is independent: shard across v7x's 2 TCs.
            dimension_semantics=("parallel",),
        ),
        cost_estimate=pl.CostEstimate(
            flops=t_pad * d,                         # the fused scale multiply
            transcendentals=0,
            bytes_accessed=t_pad * 4 + 2 * t_pad * d * 4,
        ),
    )(ids_flat, lut)

    return out_flat[:t].reshape(b, s, d)


# ---------------------------------- main -------------------------------------
if __name__ == "__main__":
    key = jax.random.PRNGKey(0)
    k_ids, k_lut = jax.random.split(key)

    ids = jax.random.randint(k_ids, (B, S), minval=0, maxval=VOCAB,
                             dtype=jnp.int32)
    lut = 0.02 * jax.random.normal(k_lut, (VOCAB, D_MODEL), jnp.float32)

    out = embeddings_forward(ids, lut)
    jax.block_until_ready(out)

    # sanity check against the pure-JAX reference of the PyTorch forward
    ref = lut[ids] * math.sqrt(D_MODEL)
    assert out.shape == (B, S, D_MODEL) and out.dtype == jnp.float32
    assert bool(jnp.all(jnp.isfinite(out)))
    assert bool(jnp.allclose(out, ref, atol=1e-5, rtol=1e-5))

    print("KERNEL_OK")
</pallas_src>

<mosaic_0001>
module attributes {stable_mosaic.version = 11 : i64} {
  func.func @kernel(%arg0: i32, %arg1: memref<16xi32, #tpu.memory_space<smem>>, %arg2: memref<256x128xf32, #tpu.memory_space<any>>, %arg3: memref<16x128xf32, #tpu.memory_space<vmem>>, %arg4: memref<16x128xf32, #tpu.memory_space<vmem>>, %arg5: memref<16x!tpu.dma_semaphore, #tpu.memory_space<semaphore_mem>>) attributes {dimension_semantics = [#tpu.dimension_semantics<parallel>], iteration_bounds = array<i64: 1>, scalar_prefetch = 1 : i64, scratch_operands = 2 : i64, tpu.core_type = #tpu.core_type<tc>, window_params = [{}, {transform_indices = @transform_1, window_bounds = array<i64: 16, 128>}]} {
    %c16_i32 = arith.constant 16 : i32
    %0 = arith.muli %arg0, %c16_i32 : i32
    %c0_i32 = arith.constant 0 : i32
    %1 = arith.addi %0, %c0_i32 : i32
    %2 = arith.index_cast %1 : i32 to index
    %3 = memref.load %arg1[%2] : memref<16xi32, #tpu.memory_space<smem>>
    %c0_i32_0 = arith.constant 0 : i32
    %c0_i32_1 = arith.constant 0 : i32
    %4 = tpu.memref_slice %arg2[%3, %c0_i32_1] : memref<256x128xf32, #tpu.memory_space<any>> -> memref<1x128xf32, #tpu.memory_space<any>>
    %c0_i32_2 = arith.constant 0 : i32
    %c0_i32_3 = arith.constant 0 : i32
    %5 = tpu.memref_slice %arg4[%c0_i32_2, %c0_i32_3] : memref<16x128xf32, #tpu.memory_space<vmem>> -> memref<1x128xf32, #tpu.memory_space<vmem>>
    %6 = tpu.memref_slice %arg5[%c0_i32_0] : memref<16x!tpu.dma_semaphore, #tpu.memory_space<semaphore_mem>> -> memref<1x!tpu.dma_semaphore, #tpu.memory_space<semaphore_mem>>
    %7 = tpu.memref_squeeze %6 : memref<1x!tpu.dma_semaphore, #tpu.memory_space<semaphore_mem>> -> memref<!tpu.dma_semaphore, #tpu.memory_space<semaphore_mem>>
    tpu.enqueue_dma source(%4 : memref<1x128xf32, #tpu.memory_space<any>>) target(%5 : memref<1x128xf32, #tpu.memory_space<vmem>>) target_semaphore(%7 : memref<!tpu.dma_semaphore, #tpu.memory_space<semaphore_mem>>)
    %c1_i32 = arith.constant 1 : i32
    %8 = arith.addi %0, %c1_i32 : i32
    %9 = arith.index_cast %8 : i32 to index
    %10 = memref.load %arg1[%9] : memref<16xi32, #tpu.memory_space<smem>>
    %c1_i32_4 = arith.constant 1 : i32
    %c0_i32_5 = arith.constant 0 : i32
    %11 = tpu.memref_slice %arg2[%10, %c0_i32_5] : memref<256x128xf32, #tpu.memory_space<any>> -> memref<1x128xf32, #tpu.memory_space<any>>
    %c1_i32_6 = arith.constant 1 : i32
    %c0_i32_7 = arith.constant 0 : i32
    %12 = tpu.memref_slice %arg4[%c1_i32_6, %c0_i32_7] : memref<16x128xf32, #tpu.memory_space<vmem>> -> memref<1x128xf32, #tpu.memory_space<vmem>>
    %13 = tpu.memref_slice %arg5[%c1_i32_4] : memref<16x!tpu.dma_semaphore, #tpu.memory_space<semaphore_mem>> -> memref<1x!tpu.dma_semaphore, #tpu.memory_space<semaphore_mem>>
    %14 = tpu.memref_squeeze %13 : memref<1x!tpu.dma_semaphore, #tpu.memory_space<semaphore_mem>> -> memref<!tpu.dma_semaphore, #tpu.memory_space<semaphore_mem>>
    tpu.enqueue_dma source(%11 : memref<1x128xf32, #tpu.memory_space<any>>) target(%12 : memref<1x128xf32, #tpu.memory_space<vmem>>) target_semaphore(%14 : memref<!tpu.dma_semaphore, #tpu.memory_space<semaphore_mem>>)
    %c2_i32 = arith.constant 2 : i32
    %15 = arith.addi %0, %c2_i32 : i32
    %16 = arith.index_cast %15 : i32 to index
    %17 = memref.load %arg1[%16] : memref<16xi32, #tpu.memory_space<smem>>
    %c2_i32_8 = arith.constant 2 : i32
    %c0_i32_9 = arith.constant 0 : i32
    %18 = tpu.memref_slice %arg2[%17, %c0_i32_9] : memref<256x128xf32, #tpu.memory_space<any>> -> memref<1x128xf32, #tpu.memory_space<any>>
    %c2_i32_10 = arith.constant 2 : i32
    %c0_i32_11 = arith.constant 0 : i32
    %19 = tpu.memref_slice %arg4[%c2_i32_10, %c0_i32_11] : memref<16x128xf32, #tpu.memory_space<vmem>> -> memref<1x128xf32, #tpu.memory_space<vmem>>
    %20 = tpu.memref_slice %arg5[%c2_i32_8] : memref<16x!tpu.dma_semaphore, #tpu.memory_space<semaphore_mem>> -> memref<1x!tpu.dma_semaphore, #tpu.memory_space<semaphore_mem>>
    %21 = tpu.memref_squeeze %20 : memref<1x!tpu.dma_semaphore, #tpu.memory_space<semaphore_mem>> -> memref<!tpu.dma_semaphore, #tpu.memory_space<semaphore_mem>>
    tpu.enqueue_dma source(%18 : memref<1x128xf32, #tpu.memory_space<any>>) target(%19 : memref<1x128xf32, #tpu.memory_space<vmem>>) target_semaphore(%21 : memref<!tpu.dma_semaphore, #tpu.memory_space<semaphore_mem>>)
    %c3_i32 = arith.constant 3 : i32
    %22 = arith.addi %0, %c3_i32 : i32
    %23 = arith.index_cast %22 : i32 to index
    %24 = memref.load %arg1[%23] : memref<16xi32, #tpu.memory_space<smem>>
    %c3_i32_12 = arith.constant 3 : i32
    %c0_i32_13 = arith.constant 0 : i32
    %25 = tpu.memref_slice %arg2[%24, %c0_i32_13] : memref<256x128xf32, #tpu.memory_space<any>> -> memref<1x128xf32, #tpu.memory_space<any>>
    %c3_i32_14 = arith.constant 3 : i32
    %c0_i32_15 = arith.constant 0 : i32
    %26 = tpu.memref_slice %arg4[%c3_i32_14, %c0_i32_15] : memref<16x128xf32, #tpu.memory_space<vmem>> -> memref<1x128xf32, #tpu.memory_space<vmem>>
    %27 = tpu.memref_slice %arg5[%c3_i32_12] : memref<16x!tpu.dma_semaphore, #tpu.memory_space<semaphore_mem>> -> memref<1x!tpu.dma_semaphore, #tpu.memory_space<semaphore_mem>>
    %28 = tpu.memref_squeeze %27 : memref<1x!tpu.dma_semaphore, #tpu.memory_space<semaphore_mem>> -> memref<!tpu.dma_semaphore, #tpu.memory_space<semaphore_mem>>
    tpu.enqueue_dma source(%25 : memref<1x128xf32, #tpu.memory_space<any>>) target(%26 : memref<1x128xf32, #tpu.memory_space<vmem>>) target_semaphore(%28 : memref<!tpu.dma_semaphore, #tpu.memory_space<semaphore_mem>>)
    %c4_i32 = arith.constant 4 : i32
    %29 = arith.addi %0, %c4_i32 : i32
    %30 = arith.index_cast %29 : i32 to index
    %31 = memref.load %arg1[%30] : memref<16xi32, #tpu.memory_space<smem>>
    %c4_i32_16 = arith.constant 4 : i32
    %c0_i32_17 = arith.constant 0 : i32
    %32 = tpu.memref_slice %arg2[%31, %c0_i32_17] : memref<256x128xf32, #tpu.memory_space<any>> -> memref<1x128xf32, #tpu.memory_space<any>>
    %c4_i32_18 = arith.constant 4 : i32
    %c0_i32_19 = arith.constant 0 : i32
    %33 = tpu.memref_slice %arg4[%c4_i32_18, %c0_i32_19] : memref<16x128xf32, #tpu.memory_space<vmem>> -> memref<1x128xf32, #tpu.memory_space<vmem>>
    %34 = tpu.memref_slice %arg5[%c4_i32_16] : memref<16x!tpu.dma_semaphore, #tpu.memory_space<semaphore_mem>> -> memref<1x!tpu.dma_semaphore, #tpu.memory_space<semaphore_mem>>
    %35 = tpu.memref_squeeze %34 : memref<1x!tpu.dma_semaphore, #tpu.memory_space<semaphore_mem>> -> memref<!tpu.dma_semaphore, #tpu.memory_space<semaphore_mem>>
    tpu.enqueue_dma source(%32 : memref<1x128xf32, #tpu.memory_space<any>>) target(%33 : memref<1x128xf32, #tpu.memory_space<vmem>>) target_semaphore(%35 : memref<!tpu.dma_semaphore, #tpu.memory_space<semaphore_mem>>)
    %c5_i32 = arith.constant 5 : i32
    %36 = arith.addi %0, %c5_i32 : i32
    %37 = arith.index_cast %36 : i32 to index
    %38 = memref.load %arg1[%37] : memref<16xi32, #tpu.memory_space<smem>>
    %c5_i32_20 = arith.constant 5 : i32
    %c0_i32_21 = arith.constant 0 : i32
    %39 = tpu.memref_slice %arg2[%38, %c0_i32_21] : memref<256x128xf32, #tpu.memory_space<any>> -> memref<1x128xf32, #tpu.memory_space<any>>
    %c5_i32_22 = arith.constant 5 : i32
    %c0_i32_23 = arith.constant 0 : i32
    %40 = tpu.memref_slice %arg4[%c5_i32_22, %c0_i32_23] : memref<16x128xf32, #tpu.memory_space<vmem>> -> memref<1x128xf32, #tpu.memory_space<vmem>>
    %41 = tpu.memref_slice %arg5[%c5_i32_20] : memref<16x!tpu.dma_semaphore, #tpu.memory_space<semaphore_mem>> -> memref<1x!tpu.dma_semaphore, #tpu.memory_space<semaphore_mem>>
    %42 = tpu.memref_squeeze %41 : memref<1x!tpu.dma_semaphore, #tpu.memory_space<semaphore_mem>> -> memref<!tpu.dma_semaphore, #tpu.memory_space<semaphore_mem>>
    tpu.enqueue_dma source(%39 : memref<1x128xf32, #tpu.memory_space<any>>) target(%40 : memref<1x128xf32, #tpu.memory_space<vmem>>) target_semaphore(%42 : memref<!tpu.dma_semaphore, #tpu.memory_space<semaphore_mem>>)
    %c6_i32 = arith.constant 6 : i32
    %43 = arith.addi %0, %c6_i32 : i32
    %44 = arith.index_cast %43 : i32 to index
    %45 = memref.load %arg1[%44] : memref<16xi32, #tpu.memory_space<smem>>
    %c6_i32_24 = arith.constant 6 : i32
    %c0_i32_25 = arith.constant 0 : i32
    %46 = tpu.memref_slice %arg2[%45, %c0_i32_25] : memref<256x128xf32, #tpu.memory_space<any>> -> memref<1x128xf32, #tpu.memory_space<any>>
    %c6_i32_26 = arith.constant 6 : i32
    %c0_i32_27 = arith.constant 0 : i32
    %47 = tpu.memref_slice %arg4[%c6_i32_26, %c0_i32_27] : memref<16x128xf32, #tpu.memory_space<vmem>> -> memref<1x128xf32, #tpu.memory_space<vmem>>
    %48 = tpu.memref_slice %arg5[%c6_i32_24] : memref<16x!tpu.dma_semaphore, #tpu.memory_space<semaphore_mem>> -> memref<1x!tpu.dma_semaphore, #tpu.memory_space<semaphore_mem>>
    %49 = tpu.memref_squeeze %48 : memref<1x!tpu.dma_semaphore, #tpu.memory_space<semaphore_mem>> -> memref<!tpu.dma_semaphore, #tpu.memory_space<semaphore_mem>>
    tpu.enqueue_dma source(%46 : memref<1x128xf32, #tpu.memory_space<any>>) target(%47 : memref<1x128xf32, #tpu.memory_space<vmem>>) target_semaphore(%49 : memref<!tpu.dma_semaphore, #tpu.memory_space<semaphore_mem>>)
    %c7_i32 = arith.constant 7 : i32
    %50 = arith.addi %0, %c7_i32 : i32
    %51 = arith.index_cast %50 : i32 to index
    %52 = memref.load %arg1[%51] : memref<16xi32, #tpu.memory_space<smem>>
    %c7_i32_28 = arith.constant 7 : i32
    %c0_i32_29 = arith.constant 0 : i32
    %53 = tpu.memref_slice %arg2[%52, %c0_i32_29] : memref<256x128xf32, #tpu.memory_space<any>> -> memref<1x128xf32, #tpu.memory_space<any>>
    %c7_i32_30 = arith.constant 7 : i32
    %c0_i32_31 = arith.constant 0 : i32
    %54 = tpu.memref_slice %arg4[%c7_i32_30, %c0_i32_31] : memref<16x128xf32, #tpu.memory_space<vmem>> -> memref<1x128xf32, #tpu.memory_space<vmem>>
    %55 = tpu.memref_slice %arg5[%c7_i32_28] : memref<16x!tpu.dma_semaphore, #tpu.memory_space<semaphore_mem>> -> memref<1x!tpu.dma_semaphore, #tpu.memory_space<semaphore_mem>>
    %56 = tpu.memref_squeeze %55 : memref<1x!tpu.dma_semaphore, #tpu.memory_space<semaphore_mem>> -> memref<!tpu.dma_semaphore, #tpu.memory_space<semaphore_mem>>
    tpu.enqueue_dma source(%53 : memref<1x128xf32, #tpu.memory_space<any>>) target(%54 : memref<1x128xf32, #tpu.memory_space<vmem>>) target_semaphore(%56 : memref<!tpu.dma_semaphore, #tpu.memory_space<semaphore_mem>>)
    %c8_i32 = arith.constant 8 : i32
    %57 = arith.addi %0, %c8_i32 : i32
    %58 = arith.index_cast %57 : i32 to index
    %59 = memref.load %arg1[%58] : memref<16xi32, #tpu.memory_space<smem>>
    %c8_i32_32 = arith.constant 8 : i32
    %c0_i32_33 = arith.constant 0 : i32
    %60 = tpu.memref_slice %arg2[%59, %c0_i32_33] : memref<256x128xf32, #tpu.memory_space<any>> -> memref<1x128xf32, #tpu.memory_space<any>>
    %c8_i32_34 = arith.constant 8 : i32
    %c0_i32_35 = arith.constant 0 : i32
    %61 = tpu.memref_slice %arg4[%c8_i32_34, %c0_i32_35] : memref<16x128xf32, #tpu.memory_space<vmem>> -> memref<1x128xf32, #tpu.memory_space<vmem>>
    %62 = tpu.memref_slice %arg5[%c8_i32_32] : memref<16x!tpu.dma_semaphore, #tpu.memory_space<semaphore_mem>> -> memref<1x!tpu.dma_semaphore, #tpu.memory_space<semaphore_mem>>
    %63 = tpu.memref_squeeze %62 : memref<1x!tpu.dma_semaphore, #tpu.memory_space<semaphore_mem>> -> memref<!tpu.dma_semaphore, #tpu.memory_space<semaphore_mem>>
    tpu.enqueue_dma source(%60 : memref<1x128xf32, #tpu.memory_space<any>>) target(%61 : memref<1x128xf32, #tpu.memory_space<vmem>>) target_semaphore(%63 : memref<!tpu.dma_semaphore, #tpu.memory_space<semaphore_mem>>)
    %c9_i32 = arith.constant 9 : i32
    %64 = arith.addi %0, %c9_i32 : i32
    %65 = arith.index_cast %64 : i32 to index
    %66 = memref.load %arg1[%65] : memref<16xi32, #tpu.memory_space<smem>>
    %c9_i32_36 = arith.constant 9 : i32
    %c0_i32_37 = arith.constant 0 : i32
    %67 = tpu.memref_slice %arg2[%66, %c0_i32_37] : memref<256x128xf32, #tpu.memory_space<any>> -> memref<1x128xf32, #tpu.memory_space<any>>
    %c9_i32_38 = arith.constant 9 : i32
    %c0_i32_39 = arith.constant 0 : i32
    %68 = tpu.memref_slice %arg4[%c9_i32_38, %c0_i32_39] : memref<16x128xf32, #tpu.memory_space<vmem>> -> memref<1x128xf32, #tpu.memory_space<vmem>>
    %69 = tpu.memref_slice %arg5[%c9_i32_36] : memref<16x!tpu.dma_semaphore, #tpu.memory_space<semaphore_mem>> -> memref<1x!tpu.dma_semaphore, #tpu.memory_space<semaphore_mem>>
    %70 = tpu.memref_squeeze %69 : memref<1x!tpu.dma_semaphore, #tpu.memory_space<semaphore_mem>> -> memref<!tpu.dma_semaphore, #tpu.memory_space<semaphore_mem>>
    tpu.enqueue_dma source(%67 : memref<1x128xf32, #tpu.memory_space<any>>) target(%68 : memref<1x128xf32, #tpu.memory_space<vmem>>) target_semaphore(%70 : memref<!tpu.dma_semaphore, #tpu.memory_space<semaphore_mem>>)
    %c10_i32 = arith.constant 10 : i32
    %71 = arith.addi %0, %c10_i32 : i32
    %72 = arith.index_cast %71 : i32 to index
    %73 = memref.load %arg1[%72] : memref<16xi32, #tpu.memory_space<smem>>
    %c10_i32_40 = arith.constant 10 : i32
    %c0_i32_41 = arith.constant 0 : i32
    %74 = tpu.memref_slice %arg2[%73, %c0_i32_41] : memref<256x128xf32, #tpu.memory_space<any>> -> memref<1x128xf32, #tpu.memory_space<any>>
    %c10_i32_42 = arith.constant 10 : i32
    %c0_i32_43 = arith.constant 0 : i32
    %75 = tpu.memref_slice %arg4[%c10_i32_42, %c0_i32_43] : memref<16x128xf32, #tpu.memory_space<vmem>> -> memref<1x128xf32, #tpu.memory_space<vmem>>
    %76 = tpu.memref_slice %arg5[%c10_i32_40] : memref<16x!tpu.dma_semaphore, #tpu.memory_space<semaphore_mem>> -> memref<1x!tpu.dma_semaphore, #tpu.memory_space<semaphore_mem>>
    %77 = tpu.memref_squeeze %76 : memref<1x!tpu.dma_semaphore, #tpu.memory_space<semaphore_mem>> -> memref<!tpu.dma_semaphore, #tpu.memory_space<semaphore_mem>>
    tpu.enqueue_dma source(%74 : memref<1x128xf32, #tpu.memory_space<any>>) target(%75 : memref<1x128xf32, #tpu.memory_space<vmem>>) target_semaphore(%77 : memref<!tpu.dma_semaphore, #tpu.memory_space<semaphore_mem>>)
    %c11_i32 = arith.constant 11 : i32
    %78 = arith.addi %0, %c11_i32 : i32
    %79 = arith.index_cast %78 : i32 to index
    %80 = memref.load %arg1[%79] : memref<16xi32, #tpu.memory_space<smem>>
    %c11_i32_44 = arith.constant 11 : i32
    %c0_i32_45 = arith.constant 0 : i32
    %81 = tpu.memref_slice %arg2[%80, %c0_i32_45] : memref<256x128xf32, #tpu.memory_space<any>> -> memref<1x128xf32, #tpu.memory_space<any>>
    %c11_i32_46 = arith.constant 11 : i32
    %c0_i32_47 = arith.constant 0 : i32
    %82 = tpu.memref_slice %arg4[%c11_i32_46, %c0_i32_47] : memref<16x128xf32, #tpu.memory_space<vmem>> -> memref<1x128xf32, #tpu.memory_space<vmem>>
    %83 = tpu.memref_slice %arg5[%c11_i32_44] : memref<16x!tpu.dma_semaphore, #tpu.memory_space<semaphore_mem>> -> memref<1x!tpu.dma_semaphore, #tpu.memory_space<semaphore_mem>>
    %84 = tpu.memref_squeeze %83 : memref<1x!tpu.dma_semaphore, #tpu.memory_space<semaphore_mem>> -> memref<!tpu.dma_semaphore, #tpu.memory_space<semaphore_mem>>
    tpu.enqueue_dma source(%81 : memref<1x128xf32, #tpu.memory_space<any>>) target(%82 : memref<1x128xf32, #tpu.memory_space<vmem>>) target_semaphore(%84 : memref<!tpu.dma_semaphore, #tpu.memory_space<semaphore_mem>>)
    %c12_i32 = arith.constant 12 : i32
    %85 = arith.addi %0, %c12_i32 : i32
    %86 = arith.index_cast %85 : i32 to index
    %87 = memref.load %arg1[%86] : memref<16xi32, #tpu.memory_space<smem>>
    %c12_i32_48 = arith.constant 12 : i32
    %c0_i32_49 = arith.constant 0 : i32
    %88 = tpu.memref_slice %arg2[%87, %c0_i32_49] : memref<256x128xf32, #tpu.memory_space<any>> -> memref<1x128xf32, #tpu.memory_space<any>>
    %c12_i32_50 = arith.constant 12 : i32
    %c0_i32_51 = arith.constant 0 : i32
    %89 = tpu.memref_slice %arg4[%c12_i32_50, %c0_i32_51] : memref<16x128xf32, #tpu.memory_space<vmem>> -> memref<1x128xf32, #tpu.memory_space<vmem>>
    %90 = tpu.memref_slice %arg5[%c12_i32_48] : memref<16x!tpu.dma_semaphore, #tpu.memory_space<semaphore_mem>> -> memref<1x!tpu.dma_semaphore, #tpu.memory_space<semaphore_mem>>
    %91 = tpu.memref_squeeze %90 : memref<1x!tpu.dma_semaphore, #tpu.memory_space<semaphore_mem>> -> memref<!tpu.dma_semaphore, #tpu.memory_space<semaphore_mem>>
    tpu.enqueue_dma source(%88 : memref<1x128xf32, #tpu.memory_space<any>>) target(%89 : memref<1x128xf32, #tpu.memory_space<vmem>>) target_semaphore(%91 : memref<!tpu.dma_semaphore, #tpu.memory_space<semaphore_mem>>)
    %c13_i32 = arith.constant 13 : i32
    %92 = arith.addi %0, %c13_i32 : i32
    %93 = arith.index_cast %92 : i32 to index
    %94 = memref.load %arg1[%93] : memref<16xi32, #tpu.memory_space<smem>>
    %c13_i32_52 = arith.constant 13 : i32
    %c0_i32_53 = arith.constant 0 : i32
    %95 = tpu.memref_slice %arg2[%94, %c0_i32_53] : memref<256x128xf32, #tpu.memory_space<any>> -> memref<1x128xf32, #tpu.memory_space<any>>
    %c13_i32_54 = arith.constant 13 : i32
    %c0_i32_55 = arith.constant 0 : i32
    %96 = tpu.memref_slice %arg4[%c13_i32_54, %c0_i32_55] : memref<16x128xf32, #tpu.memory_space<vmem>> -> memref<1x128xf32, #tpu.memory_space<vmem>>
    %97 = tpu.memref_slice %arg5[%c13_i32_52] : memref<16x!tpu.dma_semaphore, #tpu.memory_space<semaphore_mem>> -> memref<1x!tpu.dma_semaphore, #tpu.memory_space<semaphore_mem>>
    %98 = tpu.memref_squeeze %97 : memref<1x!tpu.dma_semaphore, #tpu.memory_space<semaphore_mem>> -> memref<!tpu.dma_semaphore, #tpu.memory_space<semaphore_mem>>
    tpu.enqueue_dma source(%95 : memref<1x128xf32, #tpu.memory_space<any>>) target(%96 : memref<1x128xf32, #tpu.memory_space<vmem>>) target_semaphore(%98 : memref<!tpu.dma_semaphore, #tpu.memory_space<semaphore_mem>>)
    %c14_i32 = arith.constant 14 : i32
    %99 = arith.addi %0, %c14_i32 : i32
    %100 = arith.index_cast %99 : i32 to index
    %101 = memref.load %arg1[%100] : memref<16xi32, #tpu.memory_space<smem>>
    %c14_i32_56 = arith.constant 14 : i32
    %c0_i32_57 = arith.constant 0 : i32
    %102 = tpu.memref_slice %arg2[%101, %c0_i32_57] : memref<256x128xf32, #tpu.memory_space<any>> -> memref<1x128xf32, #tpu.memory_space<any>>
    %c14_i32_58 = arith.constant 14 : i32
    %c0_i32_59 = arith.constant 0 : i32
    %103 = tpu.memref_slice %arg4[%c14_i32_58, %c0_i32_59] : memref<16x128xf32, #tpu.memory_space<vmem>> -> memref<1x128xf32, #tpu.memory_space<vmem>>
    %104 = tpu.memref_slice %arg5[%c14_i32_56] : memref<16x!tpu.dma_semaphore, #tpu.memory_space<semaphore_mem>> -> memref<1x!tpu.dma_semaphore, #tpu.memory_space<semaphore_mem>>
    %105 = tpu.memref_squeeze %104 : memref<1x!tpu.dma_semaphore, #tpu.memory_space<semaphore_mem>> -> memref<!tpu.dma_semaphore, #tpu.memory_space<semaphore_mem>>
    tpu.enqueue_dma source(%102 : memref<1x128xf32, #tpu.memory_space<any>>) target(%103 : memref<1x128xf32, #tpu.memory_space<vmem>>) target_semaphore(%105 : memref<!tpu.dma_semaphore, #tpu.memory_space<semaphore_mem>>)
    %c15_i32 = arith.constant 15 : i32
    %106 = arith.addi %0, %c15_i32 : i32
    %107 = arith.index_cast %106 : i32 to index
    %108 = memref.load %arg1[%107] : memref<16xi32, #tpu.memory_space<smem>>
    %c15_i32_60 = arith.constant 15 : i32
    %c0_i32_61 = arith.constant 0 : i32
    %109 = tpu.memref_slice %arg2[%108, %c0_i32_61] : memref<256x128xf32, #tpu.memory_space<any>> -> memref<1x128xf32, #tpu.memory_space<any>>
    %c15_i32_62 = arith.constant 15 : i32
    %c0_i32_63 = arith.constant 0 : i32
    %110 = tpu.memref_slice %arg4[%c15_i32_62, %c0_i32_63] : memref<16x128xf32, #tpu.memory_space<vmem>> -> memref<1x128xf32, #tpu.memory_space<vmem>>
    %111 = tpu.memref_slice %arg5[%c15_i32_60] : memref<16x!tpu.dma_semaphore, #tpu.memory_space<semaphore_mem>> -> memref<1x!tpu.dma_semaphore, #tpu.memory_space<semaphore_mem>>
    %112 = tpu.memref_squeeze %111 : memref<1x!tpu.dma_semaphore, #tpu.memory_space<semaphore_mem>> -> memref<!tpu.dma_semaphore, #tpu.memory_space<semaphore_mem>>
    tpu.enqueue_dma source(%109 : memref<1x128xf32, #tpu.memory_space<any>>) target(%110 : memref<1x128xf32, #tpu.memory_space<vmem>>) target_semaphore(%112 : memref<!tpu.dma_semaphore, #tpu.memory_space<semaphore_mem>>)
    %c0_i32_64 = arith.constant 0 : i32
    %c0_i32_65 = arith.constant 0 : i32
    %113 = tpu.memref_slice %arg2[%3, %c0_i32_65] : memref<256x128xf32, #tpu.memory_space<any>> -> memref<1x128xf32, #tpu.memory_space<any>>
    %c0_i32_66 = arith.constant 0 : i32
    %c0_i32_67 = arith.constant 0 : i32
    %114 = tpu.memref_slice %arg4[%c0_i32_66, %c0_i32_67] : memref<16x128xf32, #tpu.memory_space<vmem>> -> memref<1x128xf32, #tpu.memory_space<vmem>>
    %115 = tpu.memref_slice %arg5[%c0_i32_64] : memref<16x!tpu.dma_semaphore, #tpu.memory_space<semaphore_mem>> -> memref<1x!tpu.dma_semaphore, #tpu.memory_space<semaphore_mem>>
    %116 = tpu.memref_squeeze %115 : memref<1x!tpu.dma_semaphore, #tpu.memory_space<semaphore_mem>> -> memref<!tpu.dma_semaphore, #tpu.memory_space<semaphore_mem>>
    tpu.wait_dma2 semaphore(%116 : memref<!tpu.dma_semaphore, #tpu.memory_space<semaphore_mem>>) src(%113 : memref<1x128xf32, #tpu.memory_space<any>>) dst(%114 : memref<1x128xf32, #tpu.memory_space<vmem>>)
    %c1_i32_68 = arith.constant 1 : i32
    %c0_i32_69 = arith.constant 0 : i32
    %117 = tpu.memref_slice %arg2[%10, %c0_i32_69] : memref<256x128xf32, #tpu.memory_space<any>> -> memref<1x128xf32, #tpu.memory_space<any>>
    %c1_i32_70 = arith.constant 1 : i32
    %c0_i32_71 = arith.constant 0 : i32
    %118 = tpu.memref_slice %arg4[%c1_i32_70, %c0_i32_71] : memref<16x128xf32, #tpu.memory_space<vmem>> -> memref<1x128xf32, #tpu.memory_space<vmem>>
    %119 = tpu.memref_slice %arg5[%c1_i32_68] : memref<16x!tpu.dma_semaphore, #tpu.memory_space<semaphore_mem>> -> memref<1x!tpu.dma_semaphore, #tpu.memory_space<semaphore_mem>>
    %120 = tpu.memref_squeeze %119 : memref<1x!tpu.dma_semaphore, #tpu.memory_space<semaphore_mem>> -> memref<!tpu.dma_semaphore, #tpu.memory_space<semaphore_mem>>
    tpu.wait_dma2 semaphore(%120 : memref<!tpu.dma_semaphore, #tpu.memory_space<semaphore_mem>>) src(%117 : memref<1x128xf32, #tpu.memory_space<any>>) dst(%118 : memref<1x128xf32, #tpu.memory_space<vmem>>)
    %c2_i32_72 = arith.constant 2 : i32
    %c0_i32_73 = arith.constant 0 : i32
    %121 = tpu.memref_slice %arg2[%17, %c0_i32_73] : memref<256x128xf32, #tpu.memory_space<any>> -> memref<1x128xf32, #tpu.memory_space<any>>
    %c2_i32_74 = arith.constant 2 : i32
    %c0_i32_75 = arith.constant 0 : i32
    %122 = tpu.memref_slice %arg4[%c2_i32_74, %c0_i32_75] : memref<16x128xf32, #tpu.memory_space<vmem>> -> memref<1x128xf32, #tpu.memory_space<vmem>>
    %123 = tpu.memref_slice %arg5[%c2_i32_72] : memref<16x!tpu.dma_semaphore, #tpu.memory_space<semaphore_mem>> -> memref<1x!tpu.dma_semaphore, #tpu.memory_space<semaphore_mem>>
    %124 = tpu.memref_squeeze %123 : memref<1x!tpu.dma_semaphore, #tpu.memory_space<semaphore_mem>> -> memref<!tpu.dma_semaphore, #tpu.memory_space<semaphore_mem>>
    tpu.wait_dma2 semaphore(%124 : memref<!tpu.dma_semaphore, #tpu.memory_space<semaphore_mem>>) src(%121 : memref<1x128xf32, #tpu.memory_space<any>>) dst(%122 : memref<1x128xf32, #tpu.memory_space<vmem>>)
    %c3_i32_76 = arith.constant 3 : i32
    %c0_i32_77 = arith.constant 0 : i32
    %125 = tpu.memref_slice %arg2[%24, %c0_i32_77] : memref<256x128xf32, #tpu.memory_space<any>> -> memref<1x128xf32, #tpu.memory_space<any>>
    %c3_i32_78 = arith.constant 3 : i32
    %c0_i32_79 = arith.constant 0 : i32
    %126 = tpu.memref_slice %arg4[%c3_i32_78, %c0_i32_79] : memref<16x128xf32, #tpu.memory_space<vmem>> -> memref<1x128xf32, #tpu.memory_space<vmem>>
    %127 = tpu.memref_slice %arg5[%c3_i32_76] : memref<16x!tpu.dma_semaphore, #tpu.memory_space<semaphore_mem>> -> memref<1x!tpu.dma_semaphore, #tpu.memory_space<semaphore_mem>>
    %128 = tpu.memref_squeeze %127 : memref<1x!tpu.dma_semaphore, #tpu.memory_space<semaphore_mem>> -> memref<!tpu.dma_semaphore, #tpu.memory_space<semaphore_mem>>
    tpu.wait_dma2 semaphore(%128 : memref<!tpu.dma_semaphore, #tpu.memory_space<semaphore_mem>>) src(%125 : memref<1x128xf32, #tpu.memory_space<any>>) dst(%126 : memref<1x128xf32, #tpu.memory_space<vmem>>)
    %c4_i32_80 = arith.constant 4 : i32
    %c0_i32_81 = arith.constant 0 : i32
    %129 = tpu.memref_slice %arg2[%31, %c0_i32_81] : memref<256x128xf32, #tpu.memory_space<any>> -> memref<1x128xf32, #tpu.memory_space<any>>
    %c4_i32_82 = arith.constant 4 : i32
    %c0_i32_83 = arith.constant 0 : i32
    %130 = tpu.memref_slice %arg4[%c4_i32_82, %c0_i32_83] : memref<16x128xf32, #tpu.memory_space<vmem>> -> memref<1x128xf32, #tpu.memory_space<vmem>>
    %131 = tpu.memref_slice %arg5[%c4_i32_80] : memref<16x!tpu.dma_semaphore, #tpu.memory_space<semaphore_mem>> -> memref<1x!tpu.dma_semaphore, #tpu.memory_space<semaphore_mem>>
    %132 = tpu.memref_squeeze %131 : memref<1x!tpu.dma_semaphore, #tpu.memory_space<semaphore_mem>> -> memref<!tpu.dma_semaphore, #tpu.memory_space<semaphore_mem>>
    tpu.wait_dma2 semaphore(%132 : memref<!tpu.dma_semaphore, #tpu.memory_space<semaphore_mem>>) src(%129 : memref<1x128xf32, #tpu.memory_space<any>>) dst(%130 : memref<1x128xf32, #tpu.memory_space<vmem>>)
    %c5_i32_84 = arith.constant 5 : i32
    %c0_i32_85 = arith.constant 0 : i32
    %133 = tpu.memref_slice %arg2[%38, %c0_i32_85] : memref<256x128xf32, #tpu.memory_space<any>> -> memref<1x128xf32, #tpu.memory_space<any>>
    %c5_i32_86 = arith.constant 5 : i32
    %c0_i32_87 = arith.constant 0 : i32
    %134 = tpu.memref_slice %arg4[%c5_i32_86, %c0_i32_87] : memref<16x128xf32, #tpu.memory_space<vmem>> -> memref<1x128xf32, #tpu.memory_space<vmem>>
    %135 = tpu.memref_slice %arg5[%c5_i32_84] : memref<16x!tpu.dma_semaphore, #tpu.memory_space<semaphore_mem>> -> memref<1x!tpu.dma_semaphore, #tpu.memory_space<semaphore_mem>>
    %136 = tpu.memref_squeeze %135 : memref<1x!tpu.dma_semaphore, #tpu.memory_space<semaphore_mem>> -> memref<!tpu.dma_semaphore, #tpu.memory_space<semaphore_mem>>
    tpu.wait_dma2 semaphore(%136 : memref<!tpu.dma_semaphore, #tpu.memory_space<semaphore_mem>>) src(%133 : memref<1x128xf32, #tpu.memory_space<any>>) dst(%134 : memref<1x128xf32, #tpu.memory_space<vmem>>)
    %c6_i32_88 = arith.constant 6 : i32
    %c0_i32_89 = arith.constant 0 : i32
    %137 = tpu.memref_slice %arg2[%45, %c0_i32_89] : memref<256x128xf32, #tpu.memory_space<any>> -> memref<1x128xf32, #tpu.memory_space<any>>
    %c6_i32_90 = arith.constant 6 : i32
    %c0_i32_91 = arith.constant 0 : i32
    %138 = tpu.memref_slice %arg4[%c6_i32_90, %c0_i32_91] : memref<16x128xf32, #tpu.memory_space<vmem>> -> memref<1x128xf32, #tpu.memory_space<vmem>>
    %139 = tpu.memref_slice %arg5[%c6_i32_88] : memref<16x!tpu.dma_semaphore, #tpu.memory_space<semaphore_mem>> -> memref<1x!tpu.dma_semaphore, #tpu.memory_space<semaphore_mem>>
    %140 = tpu.memref_squeeze %139 : memref<1x!tpu.dma_semaphore, #tpu.memory_space<semaphore_mem>> -> memref<!tpu.dma_semaphore, #tpu.memory_space<semaphore_mem>>
    tpu.wait_dma2 semaphore(%140 : memref<!tpu.dma_semaphore, #tpu.memory_space<semaphore_mem>>) src(%137 : memref<1x128xf32, #tpu.memory_space<any>>) dst(%138 : memref<1x128xf32, #tpu.memory_space<vmem>>)
    %c7_i32_92 = arith.constant 7 : i32
    %c0_i32_93 = arith.constant 0 : i32
    %141 = tpu.memref_slice %arg2[%52, %c0_i32_93] : memref<256x128xf32, #tpu.memory_space<any>> -> memref<1x128xf32, #tpu.memory_space<any>>
    %c7_i32_94 = arith.constant 7 : i32
    %c0_i32_95 = arith.constant 0 : i32
    %142 = tpu.memref_slice %arg4[%c7_i32_94, %c0_i32_95] : memref<16x128xf32, #tpu.memory_space<vmem>> -> memref<1x128xf32, #tpu.memory_space<vmem>>
    %143 = tpu.memref_slice %arg5[%c7_i32_92] : memref<16x!tpu.dma_semaphore, #tpu.memory_space<semaphore_mem>> -> memref<1x!tpu.dma_semaphore, #tpu.memory_space<semaphore_mem>>
    %144 = tpu.memref_squeeze %143 : memref<1x!tpu.dma_semaphore, #tpu.memory_space<semaphore_mem>> -> memref<!tpu.dma_semaphore, #tpu.memory_space<semaphore_mem>>
    tpu.wait_dma2 semaphore(%144 : memref<!tpu.dma_semaphore, #tpu.memory_space<semaphore_mem>>) src(%141 : memref<1x128xf32, #tpu.memory_space<any>>) dst(%142 : memref<1x128xf32, #tpu.memory_space<vmem>>)
    %c8_i32_96 = arith.constant 8 : i32
    %c0_i32_97 = arith.constant 0 : i32
    %145 = tpu.memref_slice %arg2[%59, %c0_i32_97] : memref<256x128xf32, #tpu.memory_space<any>> -> memref<1x128xf32, #tpu.memory_space<any>>
    %c8_i32_98 = arith.constant 8 : i32
    %c0_i32_99 = arith.constant 0 : i32
    %146 = tpu.memref_slice %arg4[%c8_i32_98, %c0_i32_99] : memref<16x128xf32, #tpu.memory_space<vmem>> -> memref<1x128xf32, #tpu.memory_space<vmem>>
    %147 = tpu.memref_slice %arg5[%c8_i32_96] : memref<16x!tpu.dma_semaphore, #tpu.memory_space<semaphore_mem>> -> memref<1x!tpu.dma_semaphore, #tpu.memory_space<semaphore_mem>>
    %148 = tpu.memref_squeeze %147 : memref<1x!tpu.dma_semaphore, #tpu.memory_space<semaphore_mem>> -> memref<!tpu.dma_semaphore, #tpu.memory_space<semaphore_mem>>
    tpu.wait_dma2 semaphore(%148 : memref<!tpu.dma_semaphore, #tpu.memory_space<semaphore_mem>>) src(%145 : memref<1x128xf32, #tpu.memory_space<any>>) dst(%146 : memref<1x128xf32, #tpu.memory_space<vmem>>)
    %c9_i32_100 = arith.constant 9 : i32
    %c0_i32_101 = arith.constant 0 : i32
    %149 = tpu.memref_slice %arg2[%66, %c0_i32_101] : memref<256x128xf32, #tpu.memory_space<any>> -> memref<1x128xf32, #tpu.memory_space<any>>
    %c9_i32_102 = arith.constant 9 : i32
    %c0_i32_103 = arith.constant 0 : i32
    %150 = tpu.memref_slice %arg4[%c9_i32_102, %c0_i32_103] : memref<16x128xf32, #tpu.memory_space<vmem>> -> memref<1x128xf32, #tpu.memory_space<vmem>>
    %151 = tpu.memref_slice %arg5[%c9_i32_100] : memref<16x!tpu.dma_semaphore, #tpu.memory_space<semaphore_mem>> -> memref<1x!tpu.dma_semaphore, #tpu.memory_space<semaphore_mem>>
    %152 = tpu.memref_squeeze %151 : memref<1x!tpu.dma_semaphore, #tpu.memory_space<semaphore_mem>> -> memref<!tpu.dma_semaphore, #tpu.memory_space<semaphore_mem>>
    tpu.wait_dma2 semaphore(%152 : memref<!tpu.dma_semaphore, #tpu.memory_space<semaphore_mem>>) src(%149 : memref<1x128xf32, #tpu.memory_space<any>>) dst(%150 : memref<1x128xf32, #tpu.memory_space<vmem>>)
    %c10_i32_104 = arith.constant 10 : i32
    %c0_i32_105 = arith.constant 0 : i32
    %153 = tpu.memref_slice %arg2[%73, %c0_i32_105] : memref<256x128xf32, #tpu.memory_space<any>> -> memref<1x128xf32, #tpu.memory_space<any>>
    %c10_i32_106 = arith.constant 10 : i32
    %c0_i32_107 = arith.constant 0 : i32
    %154 = tpu.memref_slice %arg4[%c10_i32_106, %c0_i32_107] : memref<16x128xf32, #tpu.memory_space<vmem>> -> memref<1x128xf32, #tpu.memory_space<vmem>>
    %155 = tpu.memref_slice %arg5[%c10_i32_104] : memref<16x!tpu.dma_semaphore, #tpu.memory_space<semaphore_mem>> -> memref<1x!tpu.dma_semaphore, #tpu.memory_space<semaphore_mem>>
    %156 = tpu.memref_squeeze %155 : memref<1x!tpu.dma_semaphore, #tpu.memory_space<semaphore_mem>> -> memref<!tpu.dma_semaphore, #tpu.memory_space<semaphore_mem>>
    tpu.wait_dma2 semaphore(%156 : memref<!tpu.dma_semaphore, #tpu.memory_space<semaphore_mem>>) src(%153 : memref<1x128xf32, #tpu.memory_space<any>>) dst(%154 : memref<1x128xf32, #tpu.memory_space<vmem>>)
    %c11_i32_108 = arith.constant 11 : i32
    %c0_i32_109 = arith.constant 0 : i32
    %157 = tpu.memref_slice %arg2[%80, %c0_i32_109] : memref<256x128xf32, #tpu.memory_space<any>> -> memref<1x128xf32, #tpu.memory_space<any>>
    %c11_i32_110 = arith.constant 11 : i32
    %c0_i32_111 = arith.constant 0 : i32
    %158 = tpu.memref_slice %arg4[%c11_i32_110, %c0_i32_111] : memref<16x128xf32, #tpu.memory_space<vmem>> -> memref<1x128xf32, #tpu.memory_space<vmem>>
    %159 = tpu.memref_slice %arg5[%c11_i32_108] : memref<16x!tpu.dma_semaphore, #tpu.memory_space<semaphore_mem>> -> memref<1x!tpu.dma_semaphore, #tpu.memory_space<semaphore_mem>>
    %160 = tpu.memref_squeeze %159 : memref<1x!tpu.dma_semaphore, #tpu.memory_space<semaphore_mem>> -> memref<!tpu.dma_semaphore, #tpu.memory_space<semaphore_mem>>
    tpu.wait_dma2 semaphore(%160 : memref<!tpu.dma_semaphore, #tpu.memory_space<semaphore_mem>>) src(%157 : memref<1x128xf32, #tpu.memory_space<any>>) dst(%158 : memref<1x128xf32, #tpu.memory_space<vmem>>)
    %c12_i32_112 = arith.constant 12 : i32
    %c0_i32_113 = arith.constant 0 : i32
    %161 = tpu.memref_slice %arg2[%87, %c0_i32_113] : memref<256x128xf32, #tpu.memory_space<any>> -> memref<1x128xf32, #tpu.memory_space<any>>
    %c12_i32_114 = arith.constant 12 : i32
    %c0_i32_115 = arith.constant 0 : i32
    %162 = tpu.memref_slice %arg4[%c12_i32_114, %c0_i32_115] : memref<16x128xf32, #tpu.memory_space<vmem>> -> memref<1x128xf32, #tpu.memory_space<vmem>>
    %163 = tpu.memref_slice %arg5[%c12_i32_112] : memref<16x!tpu.dma_semaphore, #tpu.memory_space<semaphore_mem>> -> memref<1x!tpu.dma_semaphore, #tpu.memory_space<semaphore_mem>>
    %164 = tpu.memref_squeeze %163 : memref<1x!tpu.dma_semaphore, #tpu.memory_space<semaphore_mem>> -> memref<!tpu.dma_semaphore, #tpu.memory_space<semaphore_mem>>
    tpu.wait_dma2 semaphore(%164 : memref<!tpu.dma_semaphore, #tpu.memory_space<semaphore_mem>>) src(%161 : memref<1x128xf32, #tpu.memory_space<any>>) dst(%162 : memref<1x128xf32, #tpu.memory_space<vmem>>)
    %c13_i32_116 = arith.constant 13 : i32
    %c0_i32_117 = arith.constant 0 : i32
    %165 = tpu.memref_slice %arg2[%94, %c0_i32_117] : memref<256x128xf32, #tpu.memory_space<any>> -> memref<1x128xf32, #tpu.memory_space<any>>
    %c13_i32_118 = arith.constant 13 : i32
    %c0_i32_119 = arith.constant 0 : i32
    %166 = tpu.memref_slice %arg4[%c13_i32_118, %c0_i32_119] : memref<16x128xf32, #tpu.memory_space<vmem>> -> memref<1x128xf32, #tpu.memory_space<vmem>>
    %167 = tpu.memref_slice %arg5[%c13_i32_116] : memref<16x!tpu.dma_semaphore, #tpu.memory_space<semaphore_mem>> -> memref<1x!tpu.dma_semaphore, #tpu.memory_space<semaphore_mem>>
    %168 = tpu.memref_squeeze %167 : memref<1x!tpu.dma_semaphore, #tpu.memory_space<semaphore_mem>> -> memref<!tpu.dma_semaphore, #tpu.memory_space<semaphore_mem>>
    tpu.wait_dma2 semaphore(%168 : memref<!tpu.dma_semaphore, #tpu.memory_space<semaphore_mem>>) src(%165 : memref<1x128xf32, #tpu.memory_space<any>>) dst(%166 : memref<1x128xf32, #tpu.memory_space<vmem>>)
    %c14_i32_120 = arith.constant 14 : i32
    %c0_i32_121 = arith.constant 0 : i32
    %169 = tpu.memref_slice %arg2[%101, %c0_i32_121] : memref<256x128xf32, #tpu.memory_space<any>> -> memref<1x128xf32, #tpu.memory_space<any>>
    %c14_i32_122 = arith.constant 14 : i32
    %c0_i32_123 = arith.constant 0 : i32
    %170 = tpu.memref_slice %arg4[%c14_i32_122, %c0_i32_123] : memref<16x128xf32, #tpu.memory_space<vmem>> -> memref<1x128xf32, #tpu.memory_space<vmem>>
    %171 = tpu.memref_slice %arg5[%c14_i32_120] : memref<16x!tpu.dma_semaphore, #tpu.memory_space<semaphore_mem>> -> memref<1x!tpu.dma_semaphore, #tpu.memory_space<semaphore_mem>>
    %172 = tpu.memref_squeeze %171 : memref<1x!tpu.dma_semaphore, #tpu.memory_space<semaphore_mem>> -> memref<!tpu.dma_semaphore, #tpu.memory_space<semaphore_mem>>
    tpu.wait_dma2 semaphore(%172 : memref<!tpu.dma_semaphore, #tpu.memory_space<semaphore_mem>>) src(%169 : memref<1x128xf32, #tpu.memory_space<any>>) dst(%170 : memref<1x128xf32, #tpu.memory_space<vmem>>)
    %c15_i32_124 = arith.constant 15 : i32
    %c0_i32_125 = arith.constant 0 : i32
    %173 = tpu.memref_slice %arg2[%108, %c0_i32_125] : memref<256x128xf32, #tpu.memory_space<any>> -> memref<1x128xf32, #tpu.memory_space<any>>
    %c15_i32_126 = arith.constant 15 : i32
    %c0_i32_127 = arith.constant 0 : i32
    %174 = tpu.memref_slice %arg4[%c15_i32_126, %c0_i32_127] : memref<16x128xf32, #tpu.memory_space<vmem>> -> memref<1x128xf32, #tpu.memory_space<vmem>>
    %175 = tpu.memref_slice %arg5[%c15_i32_124] : memref<16x!tpu.dma_semaphore, #tpu.memory_space<semaphore_mem>> -> memref<1x!tpu.dma_semaphore, #tpu.memory_space<semaphore_mem>>
    %176 = tpu.memref_squeeze %175 : memref<1x!tpu.dma_semaphore, #tpu.memory_space<semaphore_mem>> -> memref<!tpu.dma_semaphore, #tpu.memory_space<semaphore_mem>>
    tpu.wait_dma2 semaphore(%176 : memref<!tpu.dma_semaphore, #tpu.memory_space<semaphore_mem>>) src(%173 : memref<1x128xf32, #tpu.memory_space<any>>) dst(%174 : memref<1x128xf32, #tpu.memory_space<vmem>>)
    %c0 = arith.constant 0 : index
    %c0_128 = arith.constant 0 : index
    %177 = vector.load %arg4[%c0, %c0_128] : memref<16x128xf32, #tpu.memory_space<vmem>>, vector<16x128xf32>
    %cst = arith.constant 11.3137083 : f32
    %178 = vector.broadcast %cst : f32 to vector<16x128xf32>
    %179 = arith.mulf %177, %178 : vector<16x128xf32>
    %c0_129 = arith.constant 0 : index
    %c0_130 = arith.constant 0 : index
    %180 = vector.load %arg3[%c0_129, %c0_130] : memref<16x128xf32, #tpu.memory_space<vmem>>, vector<16x128xf32>
    tpu.vector_store %arg3[%c0_129, %c0_130], %179 {strides = array<i32>} : memref<16x128xf32, #tpu.memory_space<vmem>>, vector<16x128xf32>,
    return
  }
  func.func @transform_1(%arg0: i32, %arg1: memref<16xi32, #tpu.memory_space<smem>>) -> (i32, i32) {
    %c0_i32 = arith.constant 0 : i32
    %c0_i32_0 = arith.constant 0 : i32
    return %arg0, %c0_i32 : i32, i32
  }
}

</mosaic_0001>

<llo_original>
// kernel: embeddings_forward.1
$region0: #{embeddings_forward.1}
  #allocation0 [shape = 'u32[]', space=smem, size = 0x4, offset = 0x4, fixed_abs, tag = 'smem constant byte address 0x4 - core index']
  #allocation1 [shape = 'u32[144,128]{1,0:T(1,128)}', space=vmem, size = 0x12000, scoped, tag = 'internal scratch']
  #allocation2 [shape = 'f32[16,128]{1,0:T(8,128)}', space=vmem, size = 0x2000, scoped, tag = 'scratch operand']
  #allocation3 [shape = 's32[16]{0}', space=sflag, size = 0x40, scoped, tag = 'scratch operand']
  #allocation4 [shape = 's32[1]{0}', space=sflag, size = 0x4, scoped, tag = 'scoped memory for embeddings_forward.1']
  #allocation5 [shape = 'u8[512]{0}', space=smem, size = 0x200, scoped, tag = 'prefetched SMEM operand 0']
  #allocation8 [shape = 's32[]', space=sflag, size = 0x4, offset = 0, fixed_abs, tag = 'sflag constant byte address 0x0 - dummy sync flag']
  #allocation9 [shape = 's32[]', space=sflag, size = 0x4, offset = 0, fixed_abs, tag = 'sflag constant byte address 0x0 - dummy sync flag']
  #allocation10 [shape = 'u32[]', space=smem, size = 0x4, offset = 0x44, fixed_abs, tag = 'smem constant byte address 0x44 - assertion arg 0']
  #allocation11 [shape = 'u32[]', space=smem, size = 0x4, offset = 0x48, fixed_abs, tag = 'smem constant byte address 0x48 - assertion arg 1']
  #allocation12 [shape = 's32[]', space=sflag, size = 0x4, offset = 0, fixed_abs, tag = 'sflag constant byte address 0x0 - dummy sync flag']
  #allocation13 [shape = 's32[]', space=sflag, size = 0x4, offset = 0, fixed_abs, tag = 'sflag constant byte address 0x0 - dummy sync flag']
  #allocation14 [shape = 's32[]', space=sflag, size = 0x4, offset = 0, fixed_abs, tag = 'sflag constant byte address 0x0 - dummy sync flag']
  #allocation15 [shape = 's32[]', space=sflag, size = 0x4, offset = 0, fixed_abs, tag = 'sflag constant byte address 0x0 - dummy sync flag']
  #allocation16 [shape = 's32[]', space=sflag, size = 0x4, offset = 0, fixed_abs, tag = 'sflag constant byte address 0x0 - dummy sync flag']
  #allocation17 [shape = 's32[]', space=sflag, size = 0x4, offset = 0, fixed_abs, tag = 'sflag constant byte address 0x0 - dummy sync flag']
  #allocation18 [shape = 's32[]', space=sflag, size = 0x4, offset = 0, fixed_abs, tag = 'sflag constant byte address 0x0 - dummy sync flag']
  #allocation19 [shape = 's32[]', space=sflag, size = 0x4, offset = 0, fixed_abs, tag = 'sflag constant byte address 0x0 - dummy sync flag']
  #allocation20 [shape = 's32[]', space=sflag, size = 0x4, offset = 0, fixed_abs, tag = 'sflag constant byte address 0x0 - dummy sync flag']
  #allocation21 [shape = 's32[]', space=sflag, size = 0x4, offset = 0, fixed_abs, tag = 'sflag constant byte address 0x0 - dummy sync flag']
  #allocation22 [shape = 's32[]', space=sflag, size = 0x4, offset = 0, fixed_abs, tag = 'sflag constant byte address 0x0 - dummy sync flag']
  #allocation23 [shape = 's32[]', space=sflag, size = 0x4, offset = 0, fixed_abs, tag = 'sflag constant byte address 0x0 - dummy sync flag']
  #allocation24 [shape = 's32[]', space=sflag, size = 0x4, offset = 0, fixed_abs, tag = 'sflag constant byte address 0x0 - dummy sync flag']
  #allocation25 [shape = 's32[]', space=sflag, size = 0x4, offset = 0, fixed_abs, tag = 'sflag constant byte address 0x0 - dummy sync flag']
  #allocation26 [shape = 's32[]', space=sflag, size = 0x4, offset = 0, fixed_abs, tag = 'sflag constant byte address 0x0 - dummy sync flag']
  #allocation27 [shape = 's32[]', space=sflag, size = 0x4, offset = 0, fixed_abs, tag = 'sflag constant byte address 0x0 - dummy sync flag']
  #allocation28 [shape = 's32[]', space=sflag, size = 0x4, offset = 0, fixed_abs, tag = 'sflag constant byte address 0x0 - dummy sync flag']
  #allocation29 [shape = 's32[]', space=sflag, size = 0x4, offset = 0, fixed_abs, tag = 'sflag constant byte address 0x0 - dummy sync flag']
  #allocation30 [shape = 's32[]', space=sflag, size = 0x4, offset = 0, fixed_abs, tag = 'sflag constant byte address 0x0 - dummy sync flag']
  #allocation31 [shape = 's32[]', space=sflag, size = 0x4, offset = 0, fixed_abs, tag = 'sflag constant byte address 0x0 - dummy sync flag']
  #allocation32 [shape = 's32[]', space=sflag, size = 0x4, offset = 0, fixed_abs, tag = 'sflag constant byte address 0x0 - dummy sync flag']
  #allocation33 [shape = 's32[]', space=sflag, size = 0x4, offset = 0, fixed_abs, tag = 'sflag constant byte address 0x0 - dummy sync flag']
  #allocation34 [shape = 's32[]', space=sflag, size = 0x4, offset = 0, fixed_abs, tag = 'sflag constant byte address 0x0 - dummy sync flag']
  #allocation35 [shape = 's32[]', space=sflag, size = 0x4, offset = 0, fixed_abs, tag = 'sflag constant byte address 0x0 - dummy sync flag']
  #allocation36 [shape = 's32[]', space=sflag, size = 0x4, offset = 0, fixed_abs, tag = 'sflag constant byte address 0x0 - dummy sync flag']
  #allocation37 [shape = 's32[]', space=sflag, size = 0x4, offset = 0, fixed_abs, tag = 'sflag constant byte address 0x0 - dummy sync flag']
  #allocation38 [shape = 's32[]', space=sflag, size = 0x4, offset = 0, fixed_abs, tag = 'sflag constant byte address 0x0 - dummy sync flag']
  #allocation39 [shape = 's32[]', space=sflag, size = 0x4, offset = 0, fixed_abs, tag = 'sflag constant byte address 0x0 - dummy sync flag']
  #allocation40 [shape = 's32[]', space=sflag, size = 0x4, offset = 0, fixed_abs, tag = 'sflag constant byte address 0x0 - dummy sync flag']
  #allocation41 [shape = 's32[]', space=sflag, size = 0x4, offset = 0, fixed_abs, tag = 'sflag constant byte address 0x0 - dummy sync flag']
  %s0 = inlined_call_operand.vmem [shape: s32[16], index: 0, kind: input, shape index: {}]
  %s1 = inlined_call_operand.hbm [shape: f32[256,128], index: 1, kind: input, shape index: {}]
  %s2 = inlined_call_operand.hbm [shape: f32[16,128], index: 2, kind: output, shape index: {}]
  %s3 = sld [smem:[#allocation0]]
  $region74: #{embeddings_forward.1} parent=0
    _
  %s5 = ssub.s32 1, %s3
  %s6 = scalar_select 0, %s5, %s3
  %s7 = sshll.u32 %s0, 4
  %s8 = int_to_ptr.vmem [resolvable:$true] %s7
  %10 = dma.vmem_to_smem %s8, 16, [#allocation5], [#allocation4]
  %11 = dma.done [#allocation4], 16
  %12 = sfence
  $region1: #{embeddings_forward.1} parent=0
    #allocation6 [shape = 'u8[8192]{0}', space=vmem, size = 0x2000, scoped, tag = 'output window, operand 0, single buffered']
    #allocation7 [shape = 's32[1]{0}', space=sflag, size = 0x4, scoped, tag = 'scoped memory for embeddings_forward.1']
    %13 = vsyncpa [#allocation7], 0
    %s14 = smul.u32 0, 16
    %s15 = sld [smem:[#allocation5 + %s14]]
    %s16 = smul.addr %s15, 16
    %s17 = scalar_lea.hbm %s1, %s16
    // Predicated region
    $region2: #{embeddings_forward.1} parent=1 // pred_check
      _
    $region3: #{embeddings_forward.1} parent=1 // pred_check_branch
      %19 = sbr.rel target = $region5
    $region4: #{embeddings_forward.1} parent=1 // pred_region
      %20 = sst [smem:[#allocation10]] [#allocation9]
      %21 = sst [smem:[#allocation11]] [#allocation8]
    $region5: #{embeddings_forward.1} parent=1 // pred_fallthru
      _
    %23 = shalt.err (0)
    %s25 = sshll.u32 [#allocation2], 4
    %s26 = int_to_ptr.vmem [resolvable:$true] %s25
    %28 = dma.hbm_to_vmem [thread:$0]  %s17, 16, %s26, [#allocation3]
    %s29 = sadd.s32 %s14, 1
    %s30 = sld [smem:[#allocation5 + %s29]]
    %s31 = smul.addr %s30, 16
    %s32 = scalar_lea.hbm %s1, %s31
    %s33 = scalar_lea.vmem [#allocation2], 1
    %s34 = scalar_lea.sflag [#allocation3], 1
    // Predicated region
    $region6: #{embeddings_forward.1} parent=1 // pred_check
      _
    $region7: #{embeddings_forward.1} parent=1 // pred_check_branch
      %36 = sbr.rel target = $region9
    $region8: #{embeddings_forward.1} parent=1 // pred_region
      %37 = sst [smem:[#allocation10]] [#allocation13]
      %38 = sst [smem:[#allocation11]] [#allocation12]
    $region9: #{embeddings_forward.1} parent=1 // pred_fallthru
      _
    %40 = shalt.err (0)
    %s42 = sshll.u32 %s33, 4
    %s43 = int_to_ptr.vmem [resolvable:$true] %s42
    %45 = dma.hbm_to_vmem [thread:$0]  %s32, 16, %s43, %s34
    %s46 = sadd.s32 %s14, 2
    %s47 = sld [smem:[#allocation5 + %s46]]
    %s48 = smul.addr %s47, 16
    %s49 = scalar_lea.hbm %s1, %s48
    %s50 = scalar_lea.vmem [#allocation2], 2
    %s51 = scalar_lea.sflag [#allocation3], 2
    // Predicated region
    $region10: #{embeddings_forward.1} parent=1 // pred_check
      _
    $region11: #{embeddings_forward.1} parent=1 // pred_check_branch
      %53 = sbr.rel target = $region13
    $region12: #{embeddings_forward.1} parent=1 // pred_region
      %54 = sst [smem:[#allocation10]] [#allocation15]
      %55 = sst [smem:[#allocation11]] [#allocation14]
    $region13: #{embeddings_forward.1} parent=1 // pred_fallthru
      _
    %57 = shalt.err (0)
    %s59 = sshll.u32 %s50, 4
    %s60 = int_to_ptr.vmem [resolvable:$true] %s59
    %62 = dma.hbm_to_vmem [thread:$0]  %s49, 16, %s60, %s51
    %s63 = sadd.s32 %s14, 3
    %s64 = sld [smem:[#allocation5 + %s63]]
    %s65 = smul.addr %s64, 16
    %s66 = scalar_lea.hbm %s1, %s65
    %s67 = scalar_lea.vmem [#allocation2], 3
    %s68 = scalar_lea.sflag [#allocation3], 3
    // Predicated region
    $region14: #{embeddings_forward.1} parent=1 // pred_check
      _
    $region15: #{embeddings_forward.1} parent=1 // pred_check_branch
      %70 = sbr.rel target = $region17
    $region16: #{embeddings_forward.1} parent=1 // pred_region
      %71 = sst [smem:[#allocation10]] [#allocation17]
      %72 = sst [smem:[#allocation11]] [#allocation16]
    $region17: #{embeddings_forward.1} parent=1 // pred_fallthru
      _
    %74 = shalt.err (0)
    %s76 = sshll.u32 %s67, 4
    %s77 = int_to_ptr.vmem [resolvable:$true] %s76
    %79 = dma.hbm_to_vmem [thread:$0]  %s66, 16, %s77, %s68
    %s80 = sadd.s32 %s14, 4
    %s81 = sld [smem:[#allocation5 + %s80]]
    %s82 = smul.addr %s81, 16
    %s83 = scalar_lea.hbm %s1, %s82
    %s84 = scalar_lea.vmem [#allocation2], 4
    %s85 = scalar_lea.sflag [#allocation3], 4
    // Predicated region
    $region18: #{embeddings_forward.1} parent=1 // pred_check
      _
    $region19: #{embeddings_forward.1} parent=1 // pred_check_branch
      %87 = sbr.rel target = $region21
    $region20: #{embeddings_forward.1} parent=1 // pred_region
      %88 = sst [smem:[#allocation10]] [#allocation19]
      %89 = sst [smem:[#allocation11]] [#allocation18]
    $region21: #{embeddings_forward.1} parent=1 // pred_fallthru
      _
    %91 = shalt.err (0)
    %s93 = sshll.u32 %s84, 4
    %s94 = int_to_ptr.vmem [resolvable:$true] %s93
    %96 = dma.hbm_to_vmem [thread:$0]  %s83, 16, %s94, %s85
    %s97 = sadd.s32 %s14, 5
    %s98 = sld [smem:[#allocation5 + %s97]]
    %s99 = smul.addr %s98, 16
    %s100 = scalar_lea.hbm %s1, %s99
    %s101 = scalar_lea.vmem [#allocation2], 5
    %s102 = scalar_lea.sflag [#allocation3], 5
    // Predicated region
    $region22: #{embeddings_forward.1} parent=1 // pred_check
      _
    $region23: #{embeddings_forward.1} parent=1 // pred_check_branch
      %104 = sbr.rel target = $region25
    $region24: #{embeddings_forward.1} parent=1 // pred_region
      %105 = sst [smem:[#allocation10]] [#allocation21]
      %106 = sst [smem:[#allocation11]] [#allocation20]
    $region25: #{embeddings_forward.1} parent=1 // pred_fallthru
      _
    %108 = shalt.err (0)
    %s110 = sshll.u32 %s101, 4
    %s111 = int_to_ptr.vmem [resolvable:$true] %s110
    %113 = dma.hbm_to_vmem [thread:$0]  %s100, 16, %s111, %s102
    %s114 = sadd.s32 %s14, 6
    %s115 = sld [smem:[#allocation5 + %s114]]
    %s116 = smul.addr %s115, 16
    %s117 = scalar_lea.hbm %s1, %s116
    %s118 = scalar_lea.vmem [#allocation2], 6
    %s119 = scalar_lea.sflag [#allocation3], 6
    // Predicated region
    $region26: #{embeddings_forward.1} parent=1 // pred_check
      _
    $region27: #{embeddings_forward.1} parent=1 // pred_check_branch
      %121 = sbr.rel target = $region29
    $region28: #{embeddings_forward.1} parent=1 // pred_region
      %122 = sst [smem:[#allocation10]] [#allocation23]
      %123 = sst [smem:[#allocation11]] [#allocation22]
    $region29: #{embeddings_forward.1} parent=1 // pred_fallthru
      _
    %125 = shalt.err (0)
    %s127 = sshll.u32 %s118, 4
    %s128 = int_to_ptr.vmem [resolvable:$true] %s127
    %130 = dma.hbm_to_vmem [thread:$0]  %s117, 16, %s128, %s119
    %s131 = sadd.s32 %s14, 7
    %s132 = sld [smem:[#allocation5 + %s131]]
    %s133 = smul.addr %s132, 16
    %s134 = scalar_lea.hbm %s1, %s133
    %s135 = scalar_lea.vmem [#allocation2], 7
    %s136 = scalar_lea.sflag [#allocation3], 7
    // Predicated region
    $region30: #{embeddings_forward.1} parent=1 // pred_check
      _
    $region31: #{embeddings_forward.1} parent=1 // pred_check_branch
      %138 = sbr.rel target = $region33
    $region32: #{embeddings_forward.1} parent=1 // pred_region
      %139 = sst [smem:[#allocation10]] [#allocation25]
      %140 = sst [smem:[#allocation11]] [#allocation24]
    $region33: #{embeddings_forward.1} parent=1 // pred_fallthru
      _
    %142 = shalt.err (0)
    %s144 = sshll.u32 %s135, 4
    %s145 = int_to_ptr.vmem [resolvable:$true] %s144
    %147 = dma.hbm_to_vmem [thread:$0]  %s134, 16, %s145, %s136
    %s148 = sadd.s32 %s14, 8
    %s149 = sld [smem:[#allocation5 + %s148]]
    %s150 = smul.addr %s149, 16
    %s151 = scalar_lea.hbm %s1, %s150
    %s152 = scalar_lea.vmem [#allocation2], 8
    %s153 = scalar_lea.sflag [#allocation3], 8
    // Predicated region
    $region34: #{embeddings_forward.1} parent=1 // pred_check
      _
    $region35: #{embeddings_forward.1} parent=1 // pred_check_branch
      %155 = sbr.rel target = $region37
    $region36: #{embeddings_forward.1} parent=1 // pred_region
      %156 = sst [smem:[#allocation10]] [#allocation27]
      %157 = sst [smem:[#allocation11]] [#allocation26]
    $region37: #{embeddings_forward.1} parent=1 // pred_fallthru
      _
    %159 = shalt.err (0)
    %s161 = sshll.u32 %s152, 4
    %s162 = int_to_ptr.vmem [resolvable:$true] %s161
    %164 = dma.hbm_to_vmem [thread:$0]  %s151, 16, %s162, %s153
    %s165 = sadd.s32 %s14, 9
    %s166 = sld [smem:[#allocation5 + %s165]]
    %s167 = smul.addr %s166, 16
    %s168 = scalar_lea.hbm %s1, %s167
    %s169 = scalar_lea.vmem [#allocation2], 9
    %s170 = scalar_lea.sflag [#allocation3], 9
    // Predicated region
    $region38: #{embeddings_forward.1} parent=1 // pred_check
      _
    $region39: #{embeddings_forward.1} parent=1 // pred_check_branch
      %172 = sbr.rel target = $region41
    $region40: #{embeddings_forward.1} parent=1 // pred_region
      %173 = sst [smem:[#allocation10]] [#allocation29]
      %174 = sst [smem:[#allocation11]] [#allocation28]
    $region41: #{embeddings_forward.1} parent=1 // pred_fallthru
      _
    %176 = shalt.err (0)
    %s178 = sshll.u32 %s169, 4
    %s179 = int_to_ptr.vmem [resolvable:$true] %s178
    %181 = dma.hbm_to_vmem [thread:$0]  %s168, 16, %s179, %s170
    %s182 = sadd.s32 %s14, 10
    %s183 = sld [smem:[#allocation5 + %s182]]
    %s184 = smul.addr %s183, 16
    %s185 = scalar_lea.hbm %s1, %s184
    %s186 = scalar_lea.vmem [#allocation2], 10
    %s187 = scalar_lea.sflag [#allocation3], 10
    // Predicated region
    $region42: #{embeddings_forward.1} parent=1 // pred_check
      _
    $region43: #{embeddings_forward.1} parent=1 // pred_check_branch
      %189 = sbr.rel target = $region45
    $region44: #{embeddings_forward.1} parent=1 // pred_region
      %190 = sst [smem:[#allocation10]] [#allocation31]
      %191 = sst [smem:[#allocation11]] [#allocation30]
    $region45: #{embeddings_forward.1} parent=1 // pred_fallthru
      _
    %193 = shalt.err (0)
    %s195 = sshll.u32 %s186, 4
    %s196 = int_to_ptr.vmem [resolvable:$true] %s195
    %198 = dma.hbm_to_vmem [thread:$0]  %s185, 16, %s196, %s187
    %s199 = sadd.s32 %s14, 11
    %s200 = sld [smem:[#allocation5 + %s199]]
    %s201 = smul.addr %s200, 16
    %s202 = scalar_lea.hbm %s1, %s201
    %s203 = scalar_lea.vmem [#allocation2], 11
    %s204 = scalar_lea.sflag [#allocation3], 11
    // Predicated region
    $region46: #{embeddings_forward.1} parent=1 // pred_check
      _
    $region47: #{embeddings_forward.1} parent=1 // pred_check_branch
      %206 = sbr.rel target = $region49
    $region48: #{embeddings_forward.1} parent=1 // pred_region
      %207 = sst [smem:[#allocation10]] [#allocation33]
      %208 = sst [smem:[#allocation11]] [#allocation32]
    $region49: #{embeddings_forward.1} parent=1 // pred_fallthru
      _
    %210 = shalt.err (0)
    %s212 = sshll.u32 %s203, 4
    %s213 = int_to_ptr.vmem [resolvable:$true] %s212
    %215 = dma.hbm_to_vmem [thread:$0]  %s202, 16, %s213, %s204
    %s216 = sadd.s32 %s14, 12
    %s217 = sld [smem:[#allocation5 + %s216]]
    %s218 = smul.addr %s217, 16
    %s219 = scalar_lea.hbm %s1, %s218
    %s220 = scalar_lea.vmem [#allocation2], 12
    %s221 = scalar_lea.sflag [#allocation3], 12
    // Predicated region
    $region50: #{embeddings_forward.1} parent=1 // pred_check
      _
    $region51: #{embeddings_forward.1} parent=1 // pred_check_branch
      %223 = sbr.rel target = $region53
    $region52: #{embeddings_forward.1} parent=1 // pred_region
      %224 = sst [smem:[#allocation10]] [#allocation35]
      %225 = sst [smem:[#allocation11]] [#allocation34]
    $region53: #{embeddings_forward.1} parent=1 // pred_fallthru
      _
    %227 = shalt.err (0)
    %s229 = sshll.u32 %s220, 4
    %s230 = int_to_ptr.vmem [resolvable:$true] %s229
    %232 = dma.hbm_to_vmem [thread:$0]  %s219, 16, %s230, %s221
    %s233 = sadd.s32 %s14, 13
    %s234 = sld [smem:[#allocation5 + %s233]]
    %s235 = smul.addr %s234, 16
    %s236 = scalar_lea.hbm %s1, %s235
    %s237 = scalar_lea.vmem [#allocation2], 13
    %s238 = scalar_lea.sflag [#allocation3], 13
    // Predicated region
    $region54: #{embeddings_forward.1} parent=1 // pred_check
      _
    $region55: #{embeddings_forward.1} parent=1 // pred_check_branch
      %240 = sbr.rel target = $region57
    $region56: #{embeddings_forward.1} parent=1 // pred_region
      %241 = sst [smem:[#allocation10]] [#allocation37]
      %242 = sst [smem:[#allocation11]] [#allocation36]
    $region57: #{embeddings_forward.1} parent=1 // pred_fallthru
      _
    %244 = shalt.err (0)
    %s246 = sshll.u32 %s237, 4
    %s247 = int_to_ptr.vmem [resolvable:$true] %s246
    %249 = dma.hbm_to_vmem [thread:$0]  %s236, 16, %s247, %s238
    %s250 = sadd.s32 %s14, 14
    %s251 = sld [smem:[#allocation5 + %s250]]
    %s252 = smul.addr %s251, 16
    %s253 = scalar_lea.hbm %s1, %s252
    %s254 = scalar_lea.vmem [#allocation2], 14
    %s255 = scalar_lea.sflag [#allocation3], 14
    // Predicated region
    $region58: #{embeddings_forward.1} parent=1 // pred_check
      _
    $region59: #{embeddings_forward.1} parent=1 // pred_check_branch
      %257 = sbr.rel target = $region61
    $region60: #{embeddings_forward.1} parent=1 // pred_region
      %258 = sst [smem:[#allocation10]] [#allocation39]
      %259 = sst [smem:[#allocation11]] [#allocation38]
    $region61: #{embeddings_forward.1} parent=1 // pred_fallthru
      _
    %261 = shalt.err (0)
    %s263 = sshll.u32 %s254, 4
    %s264 = int_to_ptr.vmem [resolvable:$true] %s263
    %266 = dma.hbm_to_vmem [thread:$0]  %s253, 16, %s264, %s255
    %s267 = sadd.s32 %s14, 15
    %s268 = sld [smem:[#allocation5 + %s267]]
    %s269 = smul.addr %s268, 16
    %s270 = scalar_lea.hbm %s1, %s269
    %s271 = scalar_lea.vmem [#allocation2], 15
    %s272 = scalar_lea.sflag [#allocation3], 15
    // Predicated region
    $region62: #{embeddings_forward.1} parent=1 // pred_check
      _
    $region63: #{embeddings_forward.1} parent=1 // pred_check_branch
      %274 = sbr.rel target = $region65
    $region64: #{embeddings_forward.1} parent=1 // pred_region
      %275 = sst [smem:[#allocation10]] [#allocation41]
      %276 = sst [smem:[#allocation11]] [#allocation40]
    $region65: #{embeddings_forward.1} parent=1 // pred_fallthru
      _
    %278 = shalt.err (0)
    %s280 = sshll.u32 %s271, 4
    %s281 = int_to_ptr.vmem [resolvable:$true] %s280
    %283 = dma.hbm_to_vmem [thread:$0]  %s270, 16, %s281, %s272
    %s284 = smul.u32 1, 1
    %s285 = sshll.u32 %s284, 4
    %286 = dma.done [#allocation3], %s285
    %s287 = sshll.u32 %s284, 4
    %288 = dma.done %s34, %s287
    %s289 = sshll.u32 %s284, 4
    %290 = dma.done %s51, %s289
    %s291 = sshll.u32 %s284, 4
    %292 = dma.done %s68, %s291
    %s293 = sshll.u32 %s284, 4
    %294 = dma.done %s85, %s293
    %s295 = sshll.u32 %s284, 4
    %296 = dma.done %s102, %s295
    %s297 = sshll.u32 %s284, 4
    %298 = dma.done %s119, %s297
    %s299 = sshll.u32 %s284, 4
    %300 = dma.done %s136, %s299
    %s301 = sshll.u32 %s284, 4
    %302 = dma.done %s153, %s301
    %s303 = sshll.u32 %s284, 4
    %304 = dma.done %s170, %s303
    %s305 = sshll.u32 %s284, 4
    %306 = dma.done %s187, %s305
    %s307 = sshll.u32 %s284, 4
    %308 = dma.done %s204, %s307
    %s309 = sshll.u32 %s284, 4
    %310 = dma.done %s221, %s309
    %s311 = sshll.u32 %s284, 4
    %312 = dma.done %s238, %s311
    %s313 = sshll.u32 %s284, 4
    %314 = dma.done %s255, %s313
    %s315 = sshll.u32 %s284, 4
    %316 = dma.done %s272, %s315
    %v317 = vld [vmem:[#allocation2] sm:$0xff]
    %v318 = vld [vmem:[#allocation2 + $0x8] sm:$0xff]
    %v319 = vmul.f32 %v317, 11.313708
    %v320 = vmul.f32 %v318, 11.313708
    %321 = vst [vmem:[#allocation6] sm:$0xff] %v319
    %322 = vst [vmem:[#allocation6 + $0x8] sm:$0xff] %v320
    // Predicated region
    $region66: #{embeddings_forward.1} parent=1 // pred_check
      _
    $region67: #{embeddings_forward.1} parent=1 // pred_check_branch
      %324 = sbr.rel (0) target = $region69
    $region68: #{embeddings_forward.1} parent=1 // pred_region
      %s326 = ssub.s32 256, 256
      %327 = vsyncadd [#allocation7], %s326
      %s328 = sshll.u32 [#allocation6], 4
      %s329 = int_to_ptr.vmem [resolvable:$true] %s328
      %334 = dma.vmem_to_hbm [thread:$0]  %s329, 256, %s2, [#allocation7], 128, 128, 8
    $region69: #{embeddings_forward.1} parent=1 // pred_fallthru
      _
    // Predicated region
    $region70: #{embeddings_forward.1} parent=1 // pred_check
      _
    $region71: #{embeddings_forward.1} parent=1 // pred_check_branch
      %336 = sbr.rel (0) target = $region73
    $region72: #{embeddings_forward.1} parent=1 // pred_region
      %337 = dma.done [#allocation7], 256
    $region73: #{embeddings_forward.1} parent=1 // pred_fallthru
      _
    %338 = vsyncpa [#allocation7], 1
  %339 = vsyncmov [#allocation3]
  %s340 = vpop.sfrf %339
  %p341 = scmp.eq.s32.totalorder %s340, 0
  %p342 = pneg %p341
  %344 = shalt.err (%p342)
  %s345 = scalar_lea.sflag [#allocation3], 1
  %346 = vsyncmov %s345
  %s347 = vpop.sfrf %346
  %p348 = scmp.eq.s32.totalorder %s347, 0
  %p349 = pneg %p348
  %351 = shalt.err (%p349)
  %s352 = scalar_lea.sflag [#allocation3], 2
  %353 = vsyncmov %s352
  %s354 = vpop.sfrf %353
  %p355 = scmp.eq.s32.totalorder %s354, 0
  %p356 = pneg %p355
  %358 = shalt.err (%p356)
  %s359 = scalar_lea.sflag [#allocation3], 3
  %360 = vsyncmov %s359
  %s361 = vpop.sfrf %360
  %p362 = scmp.eq.s32.totalorder %s361, 0
  %p363 = pneg %p362
  %365 = shalt.err (%p363)
  %s366 = scalar_lea.sflag [#allocation3], 4
  %367 = vsyncmov %s366
  %s368 = vpop.sfrf %367
  %p369 = scmp.eq.s32.totalorder %s368, 0
  %p370 = pneg %p369
  %372 = shalt.err (%p370)
  %s373 = scalar_lea.sflag [#allocation3], 5
  %374 = vsyncmov %s373
  %s375 = vpop.sfrf %374
  %p376 = scmp.eq.s32.totalorder %s375, 0
  %p377 = pneg %p376
  %379 = shalt.err (%p377)
  %s380 = scalar_lea.sflag [#allocation3], 6
  %381 = vsyncmov %s380
  %s382 = vpop.sfrf %381
  %p383 = scmp.eq.s32.totalorder %s382, 0
  %p384 = pneg %p383
  %386 = shalt.err (%p384)
  %s387 = scalar_lea.sflag [#allocation3], 7
  %388 = vsyncmov %s387
  %s389 = vpop.sfrf %388
  %p390 = scmp.eq.s32.totalorder %s389, 0
  %p391 = pneg %p390
  %393 = shalt.err (%p391)
  %s394 = scalar_lea.sflag [#allocation3], 8
  %395 = vsyncmov %s394
  %s396 = vpop.sfrf %395
  %p397 = scmp.eq.s32.totalorder %s396, 0
  %p398 = pneg %p397
  %400 = shalt.err (%p398)
  %s401 = scalar_lea.sflag [#allocation3], 9
  %402 = vsyncmov %s401
  %s403 = vpop.sfrf %402
  %p404 = scmp.eq.s32.totalorder %s403, 0
  %p405 = pneg %p404
  %407 = shalt.err (%p405)
  %s408 = scalar_lea.sflag [#allocation3], 10
  %409 = vsyncmov %s408
  %s410 = vpop.sfrf %409
  %p411 = scmp.eq.s32.totalorder %s410, 0
  %p412 = pneg %p411
  %414 = shalt.err (%p412)
  %s415 = scalar_lea.sflag [#allocation3], 11
  %416 = vsyncmov %s415
  %s417 = vpop.sfrf %416
  %p418 = scmp.eq.s32.totalorder %s417, 0
  %p419 = pneg %p418
  %421 = shalt.err (%p419)
  %s422 = scalar_lea.sflag [#allocation3], 12
  %423 = vsyncmov %s422
  %s424 = vpop.sfrf %423
  %p425 = scmp.eq.s32.totalorder %s424, 0
  %p426 = pneg %p425
  %428 = shalt.err (%p426)
  %s429 = scalar_lea.sflag [#allocation3], 13
  %430 = vsyncmov %s429
  %s431 = vpop.sfrf %430
  %p432 = scmp.eq.s32.totalorder %s431, 0
  %p433 = pneg %p432
  %435 = shalt.err (%p433)
  %s436 = scalar_lea.sflag [#allocation3], 14
  %437 = vsyncmov %s436
  %s438 = vpop.sfrf %437
  %p439 = scmp.eq.s32.totalorder %s438, 0
  %p440 = pneg %p439
  %442 = shalt.err (%p440)
  %s443 = scalar_lea.sflag [#allocation3], 15
  %444 = vsyncmov %s443
  %s445 = vpop.sfrf %444
  %p446 = scmp.eq.s32.totalorder %s445, 0
  %p447 = pneg %p446
  %449 = shalt.err (%p447)

</llo_original>
